<compile_context>
chip_gen: v5e
topology: v5e:2x2
jax: 0.10.0
libtpu: 0.0.40
codegen_flags: <defaults>
</compile_context>

<pallas_src>
from functools import partial

import jax
import jax.numpy as jnp
from jax.experimental import pallas as pl
from jax.experimental.pallas import tpu as pltpu

NUM_STATES = 42          # 6 * 7 board
NUM_ACTIONS = 7
N_CH = 20
H, W = 6, 7
CAT = N_CH * (H * W + H + W)   # 20 * 55 = 1100
CHUNK = 256                    # stage-1/2 column chunk (256-wide MXU on v6e/v7x)
CAT_PAD = 1280                 # 5 * 256 (zero-padded concat/contraction dim)
N_CHUNKS = CAT_PAD // CHUNK    # 5
K_IN = 48                      # 42 board cells + 1 constant-1 (bias) column + 5 zero pad
HID = 128
TB_MAX = 1024                  # max batch tile
SMALL_B = 256                  # below this, use a single right-sized tile


# ----------------------------- Pallas kernel --------------------------------

def _fused_kernel(xin_ref, wcat_ref, wfc_ref, wout_ref, bout_ref, out_ref, acc_ref):
    """relu(x @ Wcat) -> relu(@ Wfc) -> @ Wout + bout.  Biases b_cat/b_fc live inside the
    matmuls (constant-1 columns).  Stage 1/2 are chunked over the 1280-wide intermediate."""
    xin = xin_ref[...].astype(jnp.bfloat16)                      # (TB, 48)
    acc_ref[...] = jnp.zeros_like(acc_ref)                       # (TB, 128) f32

    # Fully-unrolled 5-chunk loop; all slices are static and 256-aligned, so the live f32
    # intermediate is only (TB, 256) and the ReLU/downcast of chunk i overlaps the MXU
    # weight pushes of chunk i+1.
    for c in range(N_CHUNKS):
        lo = c * CHUNK
        s1 = jnp.dot(xin, wcat_ref[:, lo:lo + CHUNK],
                     preferred_element_type=jnp.float32)         # (TB, 256) f32
        s1_bf = jnp.maximum(s1, 0.0).astype(jnp.bfloat16)        # fused bias-free ReLU + cast
        acc_ref[...] += jnp.dot(s1_bf, wfc_ref[lo:lo + CHUNK, :],
                                preferred_element_type=jnp.float32)

    h = jnp.maximum(acc_ref[...], 0.0).astype(jnp.bfloat16)      # (TB, 128); b_fc already in acc
    out = jnp.dot(h, wout_ref[...], preferred_element_type=jnp.float32)
    out_ref[...] = out + bout_ref[...]                           # tiny (TB, 7) f32 bias add


# ------------------------------- weight packing -------------------------------

def prepare_params(params):
    """One-time packing: build W_cat (with b_cat row + constant-1 column), pad to 1280,
    pre-transpose Wfc (with b_fc row), cast matmul operands to bf16."""
    w1, b1, w2, b2, w3, b3, wfc, bfc, wout, bout = params

    eye42 = jnp.eye(H * W, dtype=jnp.float32)
    eyeH = jnp.eye(H, dtype=jnp.float32)
    eyeW = jnp.eye(W, dtype=jnp.float32)

    # conv1 (1x1): xcat[:, c*55 + k]      = w1[c] * x[k]
    arr1 = jnp.einsum('c,pk->pck', w1, eye42)                              # (42, 20, 42)
    # conv2 (1x7): xcat[:, c*55 + 42 + i] = sum_j x[i*7+j] * w2[c, j]
    arr2 = jnp.einsum('cj,ik->ijck', w2, eyeH).reshape(H * W, N_CH, H)     # (42, 20, 6)
    # conv3 (6x1): xcat[:, c*55 + 48 + j] = sum_i x[i*7+j] * w3[c, i]
    arr3 = jnp.einsum('ci,jk->ijck', w3, eyeW).reshape(H * W, N_CH, W)     # (42, 20, 7)

    # Matches torch.cat((x1, x2, x3), 2).view(-1, 20*55) ordering.
    wcat = jnp.concatenate([arr1, arr2, arr3], axis=2).reshape(H * W, CAT)  # (42, 1100)
    bcat = jnp.concatenate([
        jnp.broadcast_to(b1[:, None], (N_CH, H * W)),
        jnp.broadcast_to(b2[:, None], (N_CH, H)),
        jnp.broadcast_to(b3[:, None], (N_CH, W)),
    ], axis=1).reshape(CAT)                                                 # (1100,)

    # W_cat (K_IN=48, CAT_PAD=1280):
    #   rows 0..41  : folded conv weights
    #   row  42     : b_cat (paired with the constant-1 input column), plus a 1.0 at column
    #                 CAT so xcat[:, CAT] == relu(1) == 1 (carrier for b_fc)
    #   rows 43..47 : zero padding
    wcat_full = jnp.zeros((K_IN, CAT_PAD), jnp.float32)
    wcat_full = wcat_full.at[:H * W, :CAT].set(wcat)
    wcat_full = wcat_full.at[H * W, :CAT].set(bcat)
    wcat_full = wcat_full.at[H * W, CAT].set(1.0)
    wcat_bf = wcat_full.astype(jnp.bfloat16)

    # Wfc^T (CAT_PAD, 128): row CAT carries b_fc; padded zero xcat columns meet zero rows.
    wfc_full = jnp.zeros((CAT_PAD, HID), jnp.float32)
    wfc_full = wfc_full.at[:CAT, :].set(wfc.T)
    wfc_full = wfc_full.at[CAT, :].set(bfc)
    wfc_bf = wfc_full.astype(jnp.bfloat16)

    wout_t = wout.T.astype(jnp.bfloat16)                                    # (128, 7)
    bout_r = bout.reshape(1, NUM_ACTIONS).astype(jnp.float32)

    return (wcat_bf, wfc_bf, wout_t, bout_r)


# ------------------------------- wrapper --------------------------------------

def _round_up(v, m):
    return ((v + m - 1) // m) * m


def _pick_tile(B):
    """Adaptive batch tile: tiny batches get one right-sized tile (multiple of 8);
    large batches get >= 2 grid steps (v7x megacore) capped at TB_MAX."""
    b8 = _round_up(max(B, 1), 8)
    if b8 <= SMALL_B:
        return b8
    half = _round_up(-(-b8 // 2), 8)
    return min(TB_MAX, half)


def _vmem_limit_bytes(tb):
    # 2x in/out tiles + f32 accumulator + one f32/bf16 chunk intermediate + 2x weights; 2x headroom.
    per_row = 2 * K_IN * 4 + 2 * NUM_ACTIONS * 4 + HID * 4 + CHUNK * (4 + 2)
    weights = 2 * 2 * (K_IN * CAT_PAD + CAT_PAD * HID + HID * NUM_ACTIONS)
    est = tb * per_row + weights + (1 << 20)
    return int(min(48 * 1024 * 1024, max(16 * 1024 * 1024, 2 * est)))


@partial(jax.jit, static_argnames=("tb",))
def _forward_impl(x, prepared, *, tb):
    wcat, wfc_t, wout_t, bout_r = prepared
    B = x.shape[0]
    Bp = _round_up(B, tb)

    xf = x.reshape(B, H * W).astype(jnp.float32)
    # Append constant-1 bias column + zero pad to K_IN, then pad the batch to a tile multiple.
    xin = jnp.concatenate(
        [xf, jnp.ones((B, 1), jnp.float32),
         jnp.zeros((B, K_IN - H * W - 1), jnp.float32)], axis=1)            # (B, 48)
    if Bp != B:
        xin = jnp.pad(xin, ((0, Bp - B), (0, 0)))

    grid = (Bp // tb,)

    def resident(shape):
        return pl.BlockSpec(shape, lambda i: (0, 0))    # weights: same block every step

    cost = pl.CostEstimate(
        flops=2 * Bp * (K_IN * CAT_PAD + CAT_PAD * HID + HID * NUM_ACTIONS),
        transcendentals=0,
        bytes_accessed=Bp * (K_IN + NUM_ACTIONS) * 4
        + 2 * (K_IN * CAT_PAD + CAT_PAD * HID + HID * NUM_ACTIONS)
        + NUM_ACTIONS * 4,
    )

    out = pl.pallas_call(
        _fused_kernel,
        out_shape=jax.ShapeDtypeStruct((Bp, NUM_ACTIONS), jnp.float32),
        grid=grid,
        in_specs=[
            pl.BlockSpec((tb, K_IN), lambda i: (i, 0)),     # activations
            resident((K_IN, CAT_PAD)),                      # W_cat  (bf16, biases folded)
            resident((CAT_PAD, HID)),                       # Wfc^T  (bf16, b_fc folded)
            resident((HID, NUM_ACTIONS)),                   # Wout^T (bf16)
            resident((1, NUM_ACTIONS)),                     # b_out  (f32)
        ],
        out_specs=pl.BlockSpec((tb, NUM_ACTIONS), lambda i: (i, 0)),
        scratch_shapes=[pltpu.VMEM((tb, HID), jnp.float32)],   # fc accumulator
        compiler_params=pltpu.CompilerParams(
            dimension_semantics=("parallel",),
            vmem_limit_bytes=_vmem_limit_bytes(tb),
        ),
        cost_estimate=cost,
    )(xin, wcat, wfc_t, wout_t, bout_r)
    return out[:B]


def deep_model_forward(x, prepared):
    """x: (B, 42) float32 (equivalent to the torch input before .view(-1, 1, 6, 7))."""
    B = x.shape[0]
    tb = _pick_tile(B)   # NOTE: re-jits per (B, tb); bucket batch sizes upstream if B varies a lot.
    return _forward_impl(x, prepared, tb=tb)


# --------------------- deterministic params + reference ----------------------

def init_params(key):
    ks = jax.random.split(key, 10)
    w1 = 0.3 * jax.random.normal(ks[0], (N_CH,), jnp.float32)        # conv1 (20,1,1,1)
    b1 = 0.1 * jax.random.normal(ks[1], (N_CH,), jnp.float32)
    w2 = 0.3 * jax.random.normal(ks[2], (N_CH, W), jnp.float32)      # conv2 (20,1,1,7)
    b2 = 0.1 * jax.random.normal(ks[3], (N_CH,), jnp.float32)
    w3 = 0.3 * jax.random.normal(ks[4], (N_CH, H), jnp.float32)      # conv3 (20,1,6,1)
    b3 = 0.1 * jax.random.normal(ks[5], (N_CH,), jnp.float32)
    wfc = 0.03 * jax.random.normal(ks[6], (HID, CAT), jnp.float32)   # fc (128, 1100)
    bfc = 0.05 * jax.random.normal(ks[7], (HID,), jnp.float32)
    wout = 0.1 * jax.random.normal(ks[8], (NUM_ACTIONS, HID), jnp.float32)
    bout = 0.05 * jax.random.normal(ks[9], (NUM_ACTIONS,), jnp.float32)
    return (w1, b1, w2, b2, w3, b3, wfc, bfc, wout, bout)


def reference_forward(x, params):
    """Pure-JAX f32 mirror of the PyTorch forward (for correctness check)."""
    w1, b1, w2, b2, w3, b3, wfc, bfc, wout, bout = params
    B = x.shape[0]
    hp = jax.lax.Precision.HIGHEST
    xb = x.reshape(B, H, W).astype(jnp.float32)
    x1 = jax.nn.relu(xb[:, None, :, :] * w1[None, :, None, None]
                     + b1[None, :, None, None]).reshape(B, N_CH, H * W)
    x2 = jax.nn.relu(jnp.einsum('bij,cj->bci', xb, w2, precision=hp)
                     + b2[None, :, None])
    x3 = jax.nn.relu(jnp.einsum('bij,ci->bcj', xb, w3, precision=hp)
                     + b3[None, :, None])
    xcat = jnp.concatenate([x1, x2, x3], axis=2).reshape(B, CAT)
    h = jax.nn.relu(jnp.dot(xcat, wfc.T, precision=hp) + bfc)
    return jnp.dot(h, wout.T, precision=hp) + bout


if __name__ == "__main__":
    key = jax.random.PRNGKey(0)
    pkey, xkey, xkey2 = jax.random.split(key, 3)
    params = init_params(pkey)
    prepared = prepare_params(params)                       # one-time weight packing

    # Small inference batch (adaptive tile = 8, single grid step).
    x_small = jax.random.normal(xkey, (2, NUM_STATES), jnp.float32)
    out_small = jax.block_until_ready(deep_model_forward(x_small, prepared))
    ref_small = reference_forward(x_small, params)
    assert out_small.shape == (2, NUM_ACTIONS), out_small.shape
    # bf16 matmul operands (f32 accumulate) + bf16-folded biases -> loose tolerance.
    assert bool(jnp.allclose(out_small, ref_small, atol=3e-2, rtol=2e-2)), (out_small, ref_small)

    # Larger batch exercises the multi-tile (>=2 grid steps) path with tail padding.
    x_big = jax.random.normal(xkey2, (530, NUM_STATES), jnp.float32)
    out_big = jax.block_until_ready(deep_model_forward(x_big, prepared))
    ref_big = reference_forward(x_big, params)
    assert out_big.shape == (530, NUM_ACTIONS), out_big.shape
    assert bool(jnp.allclose(out_big, ref_big, atol=3e-2, rtol=2e-2))

    print("KERNEL_OK")
</pallas_src>

<mosaic_0001>
module attributes {stable_mosaic.version = 11 : i64} {
  func.func @_fused_kernel(%arg0: i32, %arg1: memref<8x48xf32, #tpu.memory_space<vmem>>, %arg2: memref<48x1280xbf16, #tpu.memory_space<vmem>>, %arg3: memref<1280x128xbf16, #tpu.memory_space<vmem>>, %arg4: memref<128x7xbf16, #tpu.memory_space<vmem>>, %arg5: memref<1x7xf32, #tpu.memory_space<vmem>>, %arg6: memref<8x7xf32, #tpu.memory_space<vmem>>, %arg7: memref<8x128xf32, #tpu.memory_space<vmem>>) attributes {dimension_semantics = [#tpu.dimension_semantics<parallel>], iteration_bounds = array<i64: 1>, scalar_prefetch = 0 : i64, scratch_operands = 1 : i64, tpu.core_type = #tpu.core_type<tc>, window_params = [{transform_indices = @transform_0, window_bounds = array<i64: 8, 48>}, {pipeline_mode = #tpu.pipeline_mode<synchronous>, transform_indices = @transform_1, window_bounds = array<i64: 48, 1280>}, {pipeline_mode = #tpu.pipeline_mode<synchronous>, transform_indices = @transform_2, window_bounds = array<i64: 1280, 128>}, {pipeline_mode = #tpu.pipeline_mode<synchronous>, transform_indices = @transform_3, window_bounds = array<i64: 128, 7>}, {pipeline_mode = #tpu.pipeline_mode<synchronous>, transform_indices = @transform_4, window_bounds = array<i64: 1, 7>}, {transform_indices = @transform_5, window_bounds = array<i64: 8, 7>}]} {
    %c0 = arith.constant 0 : index
    %c0_0 = arith.constant 0 : index
    %0 = vector.load %arg1[%c0, %c0_0] : memref<8x48xf32, #tpu.memory_space<vmem>>, vector<8x48xf32>
    %1 = arith.truncf %0 : vector<8x48xf32> to vector<8x48xbf16>
    %cst = arith.constant 0.000000e+00 : f32
    %2 = vector.broadcast %cst : f32 to vector<8x128xf32>
    %c0_1 = arith.constant 0 : index
    %c0_2 = arith.constant 0 : index
    %3 = vector.load %arg7[%c0_1, %c0_2] : memref<8x128xf32, #tpu.memory_space<vmem>>, vector<8x128xf32>
    tpu.vector_store %arg7[%c0_1, %c0_2], %2 {strides = array<i32>} : memref<8x128xf32, #tpu.memory_space<vmem>>, vector<8x128xf32>,
    %c0_3 = arith.constant 0 : index
    %c0_4 = arith.constant 0 : index
    %4 = vector.load %arg2[%c0_3, %c0_4] : memref<48x1280xbf16, #tpu.memory_space<vmem>>, vector<48x256xbf16>
    %cst_5 = arith.constant dense<0.000000e+00> : vector<8x256xf32>
    %5 = tpu.matmul %1, %4, %cst_5 {dimension_numbers = #tpu.dot_dimension_numbers<[1], [0], [0], [1], [0, 0, 1, 1], [], []>} : vector<8x48xbf16>, vector<48x256xbf16>, vector<8x256xf32> -> vector<8x256xf32>
    %cst_6 = arith.constant 0.000000e+00 : f32
    %6 = vector.broadcast %cst_6 : f32 to vector<8x256xf32>
    %7 = arith.maximumf %5, %6 : vector<8x256xf32>
    %8 = arith.truncf %7 : vector<8x256xf32> to vector<8x256xbf16>
    %c0_7 = arith.constant 0 : index
    %c0_8 = arith.constant 0 : index
    %9 = vector.load %arg7[%c0_7, %c0_8] : memref<8x128xf32, #tpu.memory_space<vmem>>, vector<8x128xf32>
    %c0_9 = arith.constant 0 : index
    %c0_10 = arith.constant 0 : index
    %10 = vector.load %arg3[%c0_9, %c0_10] : memref<1280x128xbf16, #tpu.memory_space<vmem>>, vector<256x128xbf16>
    %cst_11 = arith.constant dense<0.000000e+00> : vector<8x128xf32>
    %11 = tpu.matmul %8, %10, %cst_11 {dimension_numbers = #tpu.dot_dimension_numbers<[1], [0], [0], [1], [0, 0, 1, 1], [], []>} : vector<8x256xbf16>, vector<256x128xbf16>, vector<8x128xf32> -> vector<8x128xf32>
    %12 = arith.addf %9, %11 : vector<8x128xf32>
    %c0_12 = arith.constant 0 : index
    %c0_13 = arith.constant 0 : index
    %13 = vector.load %arg7[%c0_12, %c0_13] : memref<8x128xf32, #tpu.memory_space<vmem>>, vector<8x128xf32>
    tpu.vector_store %arg7[%c0_12, %c0_13], %12 {strides = array<i32>} : memref<8x128xf32, #tpu.memory_space<vmem>>, vector<8x128xf32>,
    %c0_14 = arith.constant 0 : index
    %c256 = arith.constant 256 : index
    %14 = vector.load %arg2[%c0_14, %c256] : memref<48x1280xbf16, #tpu.memory_space<vmem>>, vector<48x256xbf16>
    %cst_15 = arith.constant dense<0.000000e+00> : vector<8x256xf32>
    %15 = tpu.matmul %1, %14, %cst_15 {dimension_numbers = #tpu.dot_dimension_numbers<[1], [0], [0], [1], [0, 0, 1, 1], [], []>} : vector<8x48xbf16>, vector<48x256xbf16>, vector<8x256xf32> -> vector<8x256xf32>
    %cst_16 = arith.constant 0.000000e+00 : f32
    %16 = vector.broadcast %cst_16 : f32 to vector<8x256xf32>
    %17 = arith.maximumf %15, %16 : vector<8x256xf32>
    %18 = arith.truncf %17 : vector<8x256xf32> to vector<8x256xbf16>
    %c0_17 = arith.constant 0 : index
    %c0_18 = arith.constant 0 : index
    %19 = vector.load %arg7[%c0_17, %c0_18] : memref<8x128xf32, #tpu.memory_space<vmem>>, vector<8x128xf32>
    %c256_19 = arith.constant 256 : index
    %c0_20 = arith.constant 0 : index
    %20 = vector.load %arg3[%c256_19, %c0_20] : memref<1280x128xbf16, #tpu.memory_space<vmem>>, vector<256x128xbf16>
    %cst_21 = arith.constant dense<0.000000e+00> : vector<8x128xf32>
    %21 = tpu.matmul %18, %20, %cst_21 {dimension_numbers = #tpu.dot_dimension_numbers<[1], [0], [0], [1], [0, 0, 1, 1], [], []>} : vector<8x256xbf16>, vector<256x128xbf16>, vector<8x128xf32> -> vector<8x128xf32>
    %22 = arith.addf %19, %21 : vector<8x128xf32>
    %c0_22 = arith.constant 0 : index
    %c0_23 = arith.constant 0 : index
    %23 = vector.load %arg7[%c0_22, %c0_23] : memref<8x128xf32, #tpu.memory_space<vmem>>, vector<8x128xf32>
    tpu.vector_store %arg7[%c0_22, %c0_23], %22 {strides = array<i32>} : memref<8x128xf32, #tpu.memory_space<vmem>>, vector<8x128xf32>,
    %c0_24 = arith.constant 0 : index
    %c512 = arith.constant 512 : index
    %24 = vector.load %arg2[%c0_24, %c512] : memref<48x1280xbf16, #tpu.memory_space<vmem>>, vector<48x256xbf16>
    %cst_25 = arith.constant dense<0.000000e+00> : vector<8x256xf32>
    %25 = tpu.matmul %1, %24, %cst_25 {dimension_numbers = #tpu.dot_dimension_numbers<[1], [0], [0], [1], [0, 0, 1, 1], [], []>} : vector<8x48xbf16>, vector<48x256xbf16>, vector<8x256xf32> -> vector<8x256xf32>
    %cst_26 = arith.constant 0.000000e+00 : f32
    %26 = vector.broadcast %cst_26 : f32 to vector<8x256xf32>
    %27 = arith.maximumf %25, %26 : vector<8x256xf32>
    %28 = arith.truncf %27 : vector<8x256xf32> to vector<8x256xbf16>
    %c0_27 = arith.constant 0 : index
    %c0_28 = arith.constant 0 : index
    %29 = vector.load %arg7[%c0_27, %c0_28] : memref<8x128xf32, #tpu.memory_space<vmem>>, vector<8x128xf32>
    %c512_29 = arith.constant 512 : index
    %c0_30 = arith.constant 0 : index
    %30 = vector.load %arg3[%c512_29, %c0_30] : memref<1280x128xbf16, #tpu.memory_space<vmem>>, vector<256x128xbf16>
    %cst_31 = arith.constant dense<0.000000e+00> : vector<8x128xf32>
    %31 = tpu.matmul %28, %30, %cst_31 {dimension_numbers = #tpu.dot_dimension_numbers<[1], [0], [0], [1], [0, 0, 1, 1], [], []>} : vector<8x256xbf16>, vector<256x128xbf16>, vector<8x128xf32> -> vector<8x128xf32>
    %32 = arith.addf %29, %31 : vector<8x128xf32>
    %c0_32 = arith.constant 0 : index
    %c0_33 = arith.constant 0 : index
    %33 = vector.load %arg7[%c0_32, %c0_33] : memref<8x128xf32, #tpu.memory_space<vmem>>, vector<8x128xf32>
    tpu.vector_store %arg7[%c0_32, %c0_33], %32 {strides = array<i32>} : memref<8x128xf32, #tpu.memory_space<vmem>>, vector<8x128xf32>,
    %c0_34 = arith.constant 0 : index
    %c768 = arith.constant 768 : index
    %34 = vector.load %arg2[%c0_34, %c768] : memref<48x1280xbf16, #tpu.memory_space<vmem>>, vector<48x256xbf16>
    %cst_35 = arith.constant dense<0.000000e+00> : vector<8x256xf32>
    %35 = tpu.matmul %1, %34, %cst_35 {dimension_numbers = #tpu.dot_dimension_numbers<[1], [0], [0], [1], [0, 0, 1, 1], [], []>} : vector<8x48xbf16>, vector<48x256xbf16>, vector<8x256xf32> -> vector<8x256xf32>
    %cst_36 = arith.constant 0.000000e+00 : f32
    %36 = vector.broadcast %cst_36 : f32 to vector<8x256xf32>
    %37 = arith.maximumf %35, %36 : vector<8x256xf32>
    %38 = arith.truncf %37 : vector<8x256xf32> to vector<8x256xbf16>
    %c0_37 = arith.constant 0 : index
    %c0_38 = arith.constant 0 : index
    %39 = vector.load %arg7[%c0_37, %c0_38] : memref<8x128xf32, #tpu.memory_space<vmem>>, vector<8x128xf32>
    %c768_39 = arith.constant 768 : index
    %c0_40 = arith.constant 0 : index
    %40 = vector.load %arg3[%c768_39, %c0_40] : memref<1280x128xbf16, #tpu.memory_space<vmem>>, vector<256x128xbf16>
    %cst_41 = arith.constant dense<0.000000e+00> : vector<8x128xf32>
    %41 = tpu.matmul %38, %40, %cst_41 {dimension_numbers = #tpu.dot_dimension_numbers<[1], [0], [0], [1], [0, 0, 1, 1], [], []>} : vector<8x256xbf16>, vector<256x128xbf16>, vector<8x128xf32> -> vector<8x128xf32>
    %42 = arith.addf %39, %41 : vector<8x128xf32>
    %c0_42 = arith.constant 0 : index
    %c0_43 = arith.constant 0 : index
    %43 = vector.load %arg7[%c0_42, %c0_43] : memref<8x128xf32, #tpu.memory_space<vmem>>, vector<8x128xf32>
    tpu.vector_store %arg7[%c0_42, %c0_43], %42 {strides = array<i32>} : memref<8x128xf32, #tpu.memory_space<vmem>>, vector<8x128xf32>,
    %c0_44 = arith.constant 0 : index
    %c1024 = arith.constant 1024 : index
    %44 = vector.load %arg2[%c0_44, %c1024] : memref<48x1280xbf16, #tpu.memory_space<vmem>>, vector<48x256xbf16>
    %cst_45 = arith.constant dense<0.000000e+00> : vector<8x256xf32>
    %45 = tpu.matmul %1, %44, %cst_45 {dimension_numbers = #tpu.dot_dimension_numbers<[1], [0], [0], [1], [0, 0, 1, 1], [], []>} : vector<8x48xbf16>, vector<48x256xbf16>, vector<8x256xf32> -> vector<8x256xf32>
    %cst_46 = arith.constant 0.000000e+00 : f32
    %46 = vector.broadcast %cst_46 : f32 to vector<8x256xf32>
    %47 = arith.maximumf %45, %46 : vector<8x256xf32>
    %48 = arith.truncf %47 : vector<8x256xf32> to vector<8x256xbf16>
    %c0_47 = arith.constant 0 : index
    %c0_48 = arith.constant 0 : index
    %49 = vector.load %arg7[%c0_47, %c0_48] : memref<8x128xf32, #tpu.memory_space<vmem>>, vector<8x128xf32>
    %c1024_49 = arith.constant 1024 : index
    %c0_50 = arith.constant 0 : index
    %50 = vector.load %arg3[%c1024_49, %c0_50] : memref<1280x128xbf16, #tpu.memory_space<vmem>>, vector<256x128xbf16>
    %cst_51 = arith.constant dense<0.000000e+00> : vector<8x128xf32>
    %51 = tpu.matmul %48, %50, %cst_51 {dimension_numbers = #tpu.dot_dimension_numbers<[1], [0], [0], [1], [0, 0, 1, 1], [], []>} : vector<8x256xbf16>, vector<256x128xbf16>, vector<8x128xf32> -> vector<8x128xf32>
    %52 = arith.addf %49, %51 : vector<8x128xf32>
    %c0_52 = arith.constant 0 : index
    %c0_53 = arith.constant 0 : index
    %53 = vector.load %arg7[%c0_52, %c0_53] : memref<8x128xf32, #tpu.memory_space<vmem>>, vector<8x128xf32>
    tpu.vector_store %arg7[%c0_52, %c0_53], %52 {strides = array<i32>} : memref<8x128xf32, #tpu.memory_space<vmem>>, vector<8x128xf32>,
    %c0_54 = arith.constant 0 : index
    %c0_55 = arith.constant 0 : index
    %54 = vector.load %arg7[%c0_54, %c0_55] : memref<8x128xf32, #tpu.memory_space<vmem>>, vector<8x128xf32>
    %cst_56 = arith.constant 0.000000e+00 : f32
    %55 = vector.broadcast %cst_56 : f32 to vector<8x128xf32>
    %56 = arith.maximumf %54, %55 : vector<8x128xf32>
    %57 = arith.truncf %56 : vector<8x128xf32> to vector<8x128xbf16>
    %c0_57 = arith.constant 0 : index
    %c0_58 = arith.constant 0 : index
    %58 = vector.load %arg4[%c0_57, %c0_58] : memref<128x7xbf16, #tpu.memory_space<vmem>>, vector<128x7xbf16>
    %cst_59 = arith.constant dense<0.000000e+00> : vector<8x7xf32>
    %59 = tpu.matmul %57, %58, %cst_59 {dimension_numbers = #tpu.dot_dimension_numbers<[1], [0], [0], [1], [0, 0, 1, 1], [], []>} : vector<8x128xbf16>, vector<128x7xbf16>, vector<8x7xf32> -> vector<8x7xf32>
    %c0_60 = arith.constant 0 : index
    %c0_61 = arith.constant 0 : index
    %60 = vector.load %arg5[%c0_60, %c0_61] : memref<1x7xf32, #tpu.memory_space<vmem>>, vector<1x7xf32>
    %61 = vector.broadcast %60 : vector<1x7xf32> to vector<8x7xf32>
    %62 = arith.addf %59, %61 : vector<8x7xf32>
    %c0_62 = arith.constant 0 : index
    %c0_63 = arith.constant 0 : index
    %63 = vector.load %arg6[%c0_62, %c0_63] : memref<8x7xf32, #tpu.memory_space<vmem>>, vector<8x7xf32>
    tpu.vector_store %arg6[%c0_62, %c0_63], %62 {strides = array<i32>} : memref<8x7xf32, #tpu.memory_space<vmem>>, vector<8x7xf32>,
    return
  }
  func.func @transform_0(%arg0: i32) -> (i32, i32) {
    %c0_i32 = arith.constant 0 : i32
    %c0_i32_0 = arith.constant 0 : i32
    return %arg0, %c0_i32 : i32, i32
  }
  func.func @transform_1(%arg0: i32) -> (i32, i32) {
    %c0_i32 = arith.constant 0 : i32
    %c0_i32_0 = arith.constant 0 : i32
    %c0_i32_1 = arith.constant 0 : i32
    return %c0_i32, %c0_i32_0 : i32, i32
  }
  func.func @transform_2(%arg0: i32) -> (i32, i32) {
    %c0_i32 = arith.constant 0 : i32
    %c0_i32_0 = arith.constant 0 : i32
    %c0_i32_1 = arith.constant 0 : i32
    return %c0_i32, %c0_i32_0 : i32, i32
  }
  func.func @transform_3(%arg0: i32) -> (i32, i32) {
    %c0_i32 = arith.constant 0 : i32
    %c0_i32_0 = arith.constant 0 : i32
    %c0_i32_1 = arith.constant 0 : i32
    return %c0_i32, %c0_i32_0 : i32, i32
  }
  func.func @transform_4(%arg0: i32) -> (i32, i32) {
    %c0_i32 = arith.constant 0 : i32
    %c0_i32_0 = arith.constant 0 : i32
    %c0_i32_1 = arith.constant 0 : i32
    return %c0_i32, %c0_i32_0 : i32, i32
  }
  func.func @transform_5(%arg0: i32) -> (i32, i32) {
    %c0_i32 = arith.constant 0 : i32
    %c0_i32_0 = arith.constant 0 : i32
    return %arg0, %c0_i32 : i32, i32
  }
}

</mosaic_0001>

<llo_original>
// kernel: _forward_impl.1
$region0: #{_forward_impl.1}
  #allocation0 [shape = 'u32[]', space=smem, size = 0x4, offset = 0x4, fixed_abs, tag = 'smem constant byte address 0x4 - core index']
  #allocation1 [shape = 'u32[72,128]{1,0:T(1,128)}', space=vmem, size = 0x9000, scoped, tag = 'internal scratch']
  #allocation2 [shape = 'f32[8,128]{1,0:T(8,128)}', space=vmem, size = 0x1000, scoped, tag = 'scratch operand']
  %s0 = inlined_call_operand.vmem [shape: f32[8,48], index: 0, kind: input, shape index: {}]
  %s1 = inlined_call_operand.hbm [shape: bf16[48,1280], index: 1, kind: input, shape index: {}]
  %s2 = inlined_call_operand.hbm [shape: bf16[1280,128], index: 2, kind: input, shape index: {}]
  %s3 = inlined_call_operand.vmem [shape: bf16[128,7], index: 3, kind: input, shape index: {}]
  %s4 = inlined_call_operand.vmem [shape: f32[1,7], index: 4, kind: input, shape index: {}]
  %s5 = inlined_call_operand.vmem [shape: f32[8,7], index: 5, kind: output, shape index: {}]
  %s6 = sld [smem:[#allocation0]]
  $region38: #{_forward_impl.1} parent=0
    _
  %s8 = ssub.s32 1, %s6
  %s9 = scalar_select 0, %s8, %s6
  $region1: #{_forward_impl.1} parent=0
    #allocation3 [shape = 'u8[122880]{0}', space=vmem, size = 0x1e000, scoped, tag = 'input window, operand 1, single buffered']
    #allocation4 [shape = 's32[1]{0}', space=sflag, size = 0x4, scoped, tag = 'scoped memory for _forward_impl.1']
    #allocation5 [shape = 'u8[327680]{0}', space=vmem, size = 0x50000, scoped, tag = 'input window, operand 2, single buffered']
    #allocation6 [shape = 's32[1]{0}', space=sflag, size = 0x4, scoped, tag = 'scoped memory for _forward_impl.1']
    %10 = vsyncpa [#allocation4], 0
    %11 = vsyncpa [#allocation6], 0
    // Predicated region
    $region2: #{_forward_impl.1} parent=1 // pred_check
      _
    $region3: #{_forward_impl.1} parent=1 // pred_check_branch
      %13 = sbr.rel (0) target = $region5
    $region4: #{_forward_impl.1} parent=1 // pred_region
      _
    $region5: #{_forward_impl.1} parent=1 // pred_fallthru
      _
    // Predicated region
    $region6: #{_forward_impl.1} parent=1 // pred_check
      _
    $region7: #{_forward_impl.1} parent=1 // pred_check_branch
      %15 = sbr.rel (0) target = $region9
    $region8: #{_forward_impl.1} parent=1 // pred_region
      %17 = vsyncadd [#allocation4], 0
      %s18 = sshll.u32 %s1, 4
      %s19 = int_to_ptr.hbm [resolvable:$true] %s18
      %s20 = sshll.u32 [#allocation3], 4
      %s21 = int_to_ptr.vmem [resolvable:$true] %s20
      %26 = dma.hbm_to_vmem [thread:$0]  %s19, 3840, %s21, [#allocation4], 640, 640, 40
    $region9: #{_forward_impl.1} parent=1 // pred_fallthru
      _
    // Predicated region
    $region10: #{_forward_impl.1} parent=1 // pred_check
      _
    $region11: #{_forward_impl.1} parent=1 // pred_check_branch
      %28 = sbr.rel (0) target = $region13
    $region12: #{_forward_impl.1} parent=1 // pred_region
      %30 = vsyncadd [#allocation6], 0
      %s31 = sshll.u32 %s2, 4
      %s32 = int_to_ptr.hbm [resolvable:$true] %s31
      %s33 = sshll.u32 [#allocation5], 4
      %s34 = int_to_ptr.vmem [resolvable:$true] %s33
      %39 = dma.hbm_to_vmem [thread:$0]  %s32, 10240, %s34, [#allocation6], 64, 64, 4
    $region13: #{_forward_impl.1} parent=1 // pred_fallthru
      _
    // Predicated region
    $region14: #{_forward_impl.1} parent=1 // pred_check
      _
    $region15: #{_forward_impl.1} parent=1 // pred_check_branch
      %41 = sbr.rel (0) target = $region17
    $region16: #{_forward_impl.1} parent=1 // pred_region
      _
    $region17: #{_forward_impl.1} parent=1 // pred_fallthru
      _
    // Predicated region
    $region18: #{_forward_impl.1} parent=1 // pred_check
      _
    $region19: #{_forward_impl.1} parent=1 // pred_check_branch
      %43 = sbr.rel (0) target = $region21
    $region20: #{_forward_impl.1} parent=1 // pred_region
      _
    $region21: #{_forward_impl.1} parent=1 // pred_fallthru
      _
    // Predicated region
    $region22: #{_forward_impl.1} parent=1 // pred_check
      _
    $region23: #{_forward_impl.1} parent=1 // pred_check_branch
      %45 = sbr.rel (0) target = $region25
    $region24: #{_forward_impl.1} parent=1 // pred_region
      %47 = dma.done [#allocation4], 3840
    $region25: #{_forward_impl.1} parent=1 // pred_fallthru
      _
    // Predicated region
    $region26: #{_forward_impl.1} parent=1 // pred_check
      _
    $region27: #{_forward_impl.1} parent=1 // pred_check_branch
      %49 = sbr.rel (0) target = $region29
    $region28: #{_forward_impl.1} parent=1 // pred_region
      %51 = dma.done [#allocation6], 10240
    $region29: #{_forward_impl.1} parent=1 // pred_fallthru
      _
    %v53 = vld [vmem:[%s0] sm:$0xff]
    %v54 = vpack.c.bf16 %v53, %v53
    %55 = vst [vmem:[#allocation2] sm:$0xff] 0.0
    %v56 = vld [vmem:[#allocation3] sm:$0xff]
    %v57 = vld [vmem:[#allocation3 + $0x28] sm:$0xff]
    %v58 = vld [vmem:[#allocation3 + $0x50] sm:$0xff]
    %v59 = vld [vmem:[#allocation3 + $0x78] sm:$0xff]
    %v60 = vld [vmem:[#allocation3 + $0xa0] sm:$0xff]
    %v61 = vld [vmem:[#allocation3 + $0xc8] sm:$0xff]
    %v68 = vunpack.c.l.b16 %v56
    %v69 = vunpack.c.h.b16 %v56
    %v70 = vunpack.c.l.b16 %v57
    %v71 = vunpack.c.h.b16 %v57
    %v72 = vunpack.c.l.b16 %v58
    %v73 = vunpack.c.h.b16 %v58
    %v74 = vunpack.c.l.b16 %v59
    %v75 = vunpack.c.h.b16 %v59
    %v76 = vunpack.c.l.b16 %v60
    %v77 = vunpack.c.h.b16 %v60
    %v78 = vunpack.c.l.b16 %v61
    %v79 = vunpack.c.h.b16 %v61
    %v80 = vpack.c.b16 %v70, %v68
    %v81 = vpack.c.b16 %v71, %v69
    %v82 = vpack.c.b16 %v74, %v72
    %v83 = vpack.c.b16 %v75, %v73
    %v84 = vpack.c.b16 %v78, %v76
    %v85 = vpack.c.b16 %v79, %v77
    %vm92 = vcmask 392192
    %v94 = vsel %vm92, %v54, 0
    %96 = vmatpush.bf16.msra.mxu0 0
    %97 = vmatpush.bf16.msra.mxu0 0
    %98 = vmatpush.bf16.msra.mxu0 0
    %99 = vmatpush.bf16.msra.mxu0 0
    %100 = vmatpush.bf16.msra.mxu0 0
    %101 = vmatpush.bf16.msra.mxu0 %v84
    %102 = vmatpush.bf16.msra.mxu0 %v82
    %103 = vmatpush.bf16.msra.mxu0 %v80
    %104 = vmatmul.bf16.gmra.mxu0 %v94
    %v105 = vpop.f32.mrf.mxu0
    %v106 = vadd.f32 0.0, %v105
    %v107 = vpop.f32.mrf.mxu0
    %108 = vdwg.mxu0
    %109 = vmatpush.bf16.msra.mxu0 0
    %110 = vmatpush.bf16.msra.mxu0 0
    %111 = vmatpush.bf16.msra.mxu0 0
    %112 = vmatpush.bf16.msra.mxu0 0
    %113 = vmatpush.bf16.msra.mxu0 0
    %114 = vmatpush.bf16.msra.mxu0 %v85
    %115 = vmatpush.bf16.msra.mxu0 %v83
    %116 = vmatpush.bf16.msra.mxu0 %v81
    %117 = vmatmul.bf16.gmra.mxu0 %v94
    %v118 = vpop.f32.mrf.mxu0
    %v119 = vadd.f32 0.0, %v118
    %v120 = vpop.f32.mrf.mxu0
    %121 = vdwg.mxu0
    %v122 = vmax.f32 %v106, 0.0
    %v123 = vmax.f32 %v119, 0.0
    %v124 = vpack.c.bf16 %v122, %v122
    %v125 = vpack.c.bf16 %v123, %v123
    %v126 = vld [vmem:[#allocation2] sm:$0xff]
    %v127 = vld [vmem:[#allocation5] sm:$0xf]
    %v128 = vld [vmem:[#allocation5 + $0x4] sm:$0xf]
    %v129 = vld [vmem:[#allocation5 + $0x8] sm:$0xf]
    %v130 = vld [vmem:[#allocation5 + $0xc] sm:$0xf]
    %v131 = vld [vmem:[#allocation5 + $0x10] sm:$0xf]
    %v132 = vld [vmem:[#allocation5 + $0x14] sm:$0xf]
    %v133 = vld [vmem:[#allocation5 + $0x18] sm:$0xf]
    %v134 = vld [vmem:[#allocation5 + $0x1c] sm:$0xf]
    %v135 = vld [vmem:[#allocation5 + $0x20] sm:$0xf]
    %v136 = vld [vmem:[#allocation5 + $0x24] sm:$0xf]
    %v137 = vld [vmem:[#allocation5 + $0x28] sm:$0xf]
    %v138 = vld [vmem:[#allocation5 + $0x2c] sm:$0xf]
    %v139 = vld [vmem:[#allocation5 + $0x30] sm:$0xf]
    %v140 = vld [vmem:[#allocation5 + $0x34] sm:$0xf]
    %v141 = vld [vmem:[#allocation5 + $0x38] sm:$0xf]
    %v142 = vld [vmem:[#allocation5 + $0x3c] sm:$0xf]
    %v143 = vld [vmem:[#allocation5 + $0x40] sm:$0xf]
    %v144 = vld [vmem:[#allocation5 + $0x44] sm:$0xf]
    %v145 = vld [vmem:[#allocation5 + $0x48] sm:$0xf]
    %v146 = vld [vmem:[#allocation5 + $0x4c] sm:$0xf]
    %v147 = vld [vmem:[#allocation5 + $0x50] sm:$0xf]
    %v148 = vld [vmem:[#allocation5 + $0x54] sm:$0xf]
    %v149 = vld [vmem:[#allocation5 + $0x58] sm:$0xf]
    %v150 = vld [vmem:[#allocation5 + $0x5c] sm:$0xf]
    %v151 = vld [vmem:[#allocation5 + $0x60] sm:$0xf]
    %v152 = vld [vmem:[#allocation5 + $0x64] sm:$0xf]
    %v153 = vld [vmem:[#allocation5 + $0x68] sm:$0xf]
    %v154 = vld [vmem:[#allocation5 + $0x6c] sm:$0xf]
    %v155 = vld [vmem:[#allocation5 + $0x70] sm:$0xf]
    %v156 = vld [vmem:[#allocation5 + $0x74] sm:$0xf]
    %v157 = vld [vmem:[#allocation5 + $0x78] sm:$0xf]
    %v158 = vld [vmem:[#allocation5 + $0x7c] sm:$0xf]
    %v191 = vunpack.c.l.b16 %v127
    %v192 = vunpack.c.l.b16 %v128
    %v193 = vunpack.c.l.b16 %v129
    %v194 = vunpack.c.l.b16 %v130
    %v195 = vunpack.c.l.b16 %v131
    %v196 = vunpack.c.l.b16 %v132
    %v197 = vunpack.c.l.b16 %v133
    %v198 = vunpack.c.l.b16 %v134
    %v199 = vunpack.c.l.b16 %v135
    %v200 = vunpack.c.l.b16 %v136
    %v201 = vunpack.c.l.b16 %v137
    %v202 = vunpack.c.l.b16 %v138
    %v203 = vunpack.c.l.b16 %v139
    %v204 = vunpack.c.l.b16 %v140
    %v205 = vunpack.c.l.b16 %v141
    %v206 = vunpack.c.l.b16 %v142
    %v207 = vunpack.c.l.b16 %v143
    %v208 = vunpack.c.l.b16 %v144
    %v209 = vunpack.c.l.b16 %v145
    %v210 = vunpack.c.l.b16 %v146
    %v211 = vunpack.c.l.b16 %v147
    %v212 = vunpack.c.l.b16 %v148
    %v213 = vunpack.c.l.b16 %v149
    %v214 = vunpack.c.l.b16 %v150
    %v215 = vunpack.c.l.b16 %v151
    %v216 = vunpack.c.l.b16 %v152
    %v217 = vunpack.c.l.b16 %v153
    %v218 = vunpack.c.l.b16 %v154
    %v219 = vunpack.c.l.b16 %v155
    %v220 = vunpack.c.l.b16 %v156
    %v221 = vunpack.c.l.b16 %v157
    %v222 = vunpack.c.l.b16 %v158
    %v223 = vpack.c.b16 %v192, %v191
    %v224 = vpack.c.b16 %v194, %v193
    %v225 = vpack.c.b16 %v196, %v195
    %v226 = vpack.c.b16 %v198, %v197
    %v227 = vpack.c.b16 %v200, %v199
    %v228 = vpack.c.b16 %v202, %v201
    %v229 = vpack.c.b16 %v204, %v203
    %v230 = vpack.c.b16 %v206, %v205
    %v231 = vpack.c.b16 %v208, %v207
    %v232 = vpack.c.b16 %v210, %v209
    %v233 = vpack.c.b16 %v212, %v211
    %v234 = vpack.c.b16 %v214, %v213
    %v235 = vpack.c.b16 %v216, %v215
    %v236 = vpack.c.b16 %v218, %v217
    %v237 = vpack.c.b16 %v220, %v219
    %v238 = vpack.c.b16 %v222, %v221
    %255 = vmatpush.bf16.msra.mxu0 %v230
    %256 = vmatpush.bf16.msra.mxu0 %v229
    %257 = vmatpush.bf16.msra.mxu0 %v228
    %258 = vmatpush.bf16.msra.mxu0 %v227
    %259 = vmatpush.bf16.msra.mxu0 %v226
    %260 = vmatpush.bf16.msra.mxu0 %v225
    %261 = vmatpush.bf16.msra.mxu0 %v224
    %262 = vmatpush.bf16.msra.mxu0 %v223
    %263 = vmatmul.bf16.gmra.mxu0 %v124
    %v264 = vpop.f32.mrf.mxu0
    %v265 = vadd.f32 0.0, %v264
    %v266 = vpop.f32.mrf.mxu0
    %267 = vdwg.mxu0
    %268 = vmatpush.bf16.msra.mxu0 %v238
    %269 = vmatpush.bf16.msra.mxu0 %v237
    %270 = vmatpush.bf16.msra.mxu0 %v236
    %271 = vmatpush.bf16.msra.mxu0 %v235
    %272 = vmatpush.bf16.msra.mxu0 %v234
    %273 = vmatpush.bf16.msra.mxu0 %v233
    %274 = vmatpush.bf16.msra.mxu0 %v232
    %275 = vmatpush.bf16.msra.mxu0 %v231
    %276 = vmatmul.bf16.gmra.mxu0 %v125
    %v277 = vpop.f32.mrf.mxu0
    %v278 = vadd.f32 %v265, %v277
    %v279 = vpop.f32.mrf.mxu0
    %280 = vdwg.mxu0
    %v281 = vadd.f32 %v126, %v278
    %282 = vst [vmem:[#allocation2] sm:$0xff] %v281
    %v283 = vld [vmem:[#allocation3 + $0x8] sm:$0xff]
    %v284 = vld [vmem:[#allocation3 + $0x30] sm:$0xff]
    %v285 = vld [vmem:[#allocation3 + $0x58] sm:$0xff]
    %v286 = vld [vmem:[#allocation3 + $0x80] sm:$0xff]
    %v287 = vld [vmem:[#allocation3 + $0xa8] sm:$0xff]
    %v288 = vld [vmem:[#allocation3 + $0xd0] sm:$0xff]
    %v295 = vunpack.c.l.b16 %v283
    %v296 = vunpack.c.h.b16 %v283
    %v297 = vunpack.c.l.b16 %v284
    %v298 = vunpack.c.h.b16 %v284
    %v299 = vunpack.c.l.b16 %v285
    %v300 = vunpack.c.h.b16 %v285
    %v301 = vunpack.c.l.b16 %v286
    %v302 = vunpack.c.h.b16 %v286
    %v303 = vunpack.c.l.b16 %v287
    %v304 = vunpack.c.h.b16 %v287
    %v305 = vunpack.c.l.b16 %v288
    %v306 = vunpack.c.h.b16 %v288
    %v307 = vpack.c.b16 %v297, %v295
    %v308 = vpack.c.b16 %v298, %v296
    %v309 = vpack.c.b16 %v301, %v299
    %v310 = vpack.c.b16 %v302, %v300
    %v311 = vpack.c.b16 %v305, %v303
    %v312 = vpack.c.b16 %v306, %v304
    %319 = vmatpush.bf16.msra.mxu0 0
    %320 = vmatpush.bf16.msra.mxu0 0
    %321 = vmatpush.bf16.msra.mxu0 0
    %322 = vmatpush.bf16.msra.mxu0 0
    %323 = vmatpush.bf16.msra.mxu0 0
    %324 = vmatpush.bf16.msra.mxu0 %v311
    %325 = vmatpush.bf16.msra.mxu0 %v309
    %326 = vmatpush.bf16.msra.mxu0 %v307
    %327 = vmatmul.bf16.gmra.mxu0 %v94
    %v328 = vpop.f32.mrf.mxu0
    %v329 = vadd.f32 0.0, %v328
    %v330 = vpop.f32.mrf.mxu0
    %331 = vdwg.mxu0
    %332 = vmatpush.bf16.msra.mxu0 0
    %333 = vmatpush.bf16.msra.mxu0 0
    %334 = vmatpush.bf16.msra.mxu0 0
    %335 = vmatpush.bf16.msra.mxu0 0
    %336 = vmatpush.bf16.msra.mxu0 0
    %337 = vmatpush.bf16.msra.mxu0 %v312
    %338 = vmatpush.bf16.msra.mxu0 %v310
    %339 = vmatpush.bf16.msra.mxu0 %v308
    %340 = vmatmul.bf16.gmra.mxu0 %v94
    %v341 = vpop.f32.mrf.mxu0
    %v342 = vadd.f32 0.0, %v341
    %v343 = vpop.f32.mrf.mxu0
    %344 = vdwg.mxu0
    %v345 = vmax.f32 %v329, 0.0
    %v346 = vmax.f32 %v342, 0.0
    %v347 = vpack.c.bf16 %v345, %v345
    %v348 = vpack.c.bf16 %v346, %v346
    %v349 = vld [vmem:[#allocation2] sm:$0xff]
    %v350 = vld [vmem:[#allocation5 + $0x80] sm:$0xf]
    %v351 = vld [vmem:[#allocation5 + $0x84] sm:$0xf]
    %v352 = vld [vmem:[#allocation5 + $0x88] sm:$0xf]
    %v353 = vld [vmem:[#allocation5 + $0x8c] sm:$0xf]
    %v354 = vld [vmem:[#allocation5 + $0x90] sm:$0xf]
    %v355 = vld [vmem:[#allocation5 + $0x94] sm:$0xf]
    %v356 = vld [vmem:[#allocation5 + $0x98] sm:$0xf]
    %v357 = vld [vmem:[#allocation5 + $0x9c] sm:$0xf]
    %v358 = vld [vmem:[#allocation5 + $0xa0] sm:$0xf]
    %v359 = vld [vmem:[#allocation5 + $0xa4] sm:$0xf]
    %v360 = vld [vmem:[#allocation5 + $0xa8] sm:$0xf]
    %v361 = vld [vmem:[#allocation5 + $0xac] sm:$0xf]
    %v362 = vld [vmem:[#allocation5 + $0xb0] sm:$0xf]
    %v363 = vld [vmem:[#allocation5 + $0xb4] sm:$0xf]
    %v364 = vld [vmem:[#allocation5 + $0xb8] sm:$0xf]
    %v365 = vld [vmem:[#allocation5 + $0xbc] sm:$0xf]
    %v366 = vld [vmem:[#allocation5 + $0xc0] sm:$0xf]
    %v367 = vld [vmem:[#allocation5 + $0xc4] sm:$0xf]
    %v368 = vld [vmem:[#allocation5 + $0xc8] sm:$0xf]
    %v369 = vld [vmem:[#allocation5 + $0xcc] sm:$0xf]
    %v370 = vld [vmem:[#allocation5 + $0xd0] sm:$0xf]
    %v371 = vld [vmem:[#allocation5 + $0xd4] sm:$0xf]
    %v372 = vld [vmem:[#allocation5 + $0xd8] sm:$0xf]
    %v373 = vld [vmem:[#allocation5 + $0xdc] sm:$0xf]
    %v374 = vld [vmem:[#allocation5 + $0xe0] sm:$0xf]
    %v375 = vld [vmem:[#allocation5 + $0xe4] sm:$0xf]
    %v376 = vld [vmem:[#allocation5 + $0xe8] sm:$0xf]
    %v377 = vld [vmem:[#allocation5 + $0xec] sm:$0xf]
    %v378 = vld [vmem:[#allocation5 + $0xf0] sm:$0xf]
    %v379 = vld [vmem:[#allocation5 + $0xf4] sm:$0xf]
    %v380 = vld [vmem:[#allocation5 + $0xf8] sm:$0xf]
    %v381 = vld [vmem:[#allocation5 + $0xfc] sm:$0xf]
    %v414 = vunpack.c.l.b16 %v350
    %v415 = vunpack.c.l.b16 %v351
    %v416 = vunpack.c.l.b16 %v352
    %v417 = vunpack.c.l.b16 %v353
    %v418 = vunpack.c.l.b16 %v354
    %v419 = vunpack.c.l.b16 %v355
    %v420 = vunpack.c.l.b16 %v356
    %v421 = vunpack.c.l.b16 %v357
    %v422 = vunpack.c.l.b16 %v358
    %v423 = vunpack.c.l.b16 %v359
    %v424 = vunpack.c.l.b16 %v360
    %v425 = vunpack.c.l.b16 %v361
    %v426 = vunpack.c.l.b16 %v362
    %v427 = vunpack.c.l.b16 %v363
    %v428 = vunpack.c.l.b16 %v364
    %v429 = vunpack.c.l.b16 %v365
    %v430 = vunpack.c.l.b16 %v366
    %v431 = vunpack.c.l.b16 %v367
    %v432 = vunpack.c.l.b16 %v368
    %v433 = vunpack.c.l.b16 %v369
    %v434 = vunpack.c.l.b16 %v370
    %v435 = vunpack.c.l.b16 %v371
    %v436 = vunpack.c.l.b16 %v372
    %v437 = vunpack.c.l.b16 %v373
    %v438 = vunpack.c.l.b16 %v374
    %v439 = vunpack.c.l.b16 %v375
    %v440 = vunpack.c.l.b16 %v376
    %v441 = vunpack.c.l.b16 %v377
    %v442 = vunpack.c.l.b16 %v378
    %v443 = vunpack.c.l.b16 %v379
    %v444 = vunpack.c.l.b16 %v380
    %v445 = vunpack.c.l.b16 %v381
    %v446 = vpack.c.b16 %v415, %v414
    %v447 = vpack.c.b16 %v417, %v416
    %v448 = vpack.c.b16 %v419, %v418
    %v449 = vpack.c.b16 %v421, %v420
    %v450 = vpack.c.b16 %v423, %v422
    %v451 = vpack.c.b16 %v425, %v424
    %v452 = vpack.c.b16 %v427, %v426
    %v453 = vpack.c.b16 %v429, %v428
    %v454 = vpack.c.b16 %v431, %v430
    %v455 = vpack.c.b16 %v433, %v432
    %v456 = vpack.c.b16 %v435, %v434
    %v457 = vpack.c.b16 %v437, %v436
    %v458 = vpack.c.b16 %v439, %v438
    %v459 = vpack.c.b16 %v441, %v440
    %v460 = vpack.c.b16 %v443, %v442
    %v461 = vpack.c.b16 %v445, %v444
    %478 = vmatpush.bf16.msra.mxu0 %v453
    %479 = vmatpush.bf16.msra.mxu0 %v452
    %480 = vmatpush.bf16.msra.mxu0 %v451
    %481 = vmatpush.bf16.msra.mxu0 %v450
    %482 = vmatpush.bf16.msra.mxu0 %v449
    %483 = vmatpush.bf16.msra.mxu0 %v448
    %484 = vmatpush.bf16.msra.mxu0 %v447
    %485 = vmatpush.bf16.msra.mxu0 %v446
    %486 = vmatmul.bf16.gmra.mxu0 %v347
    %v487 = vpop.f32.mrf.mxu0
    %v488 = vadd.f32 0.0, %v487
    %v489 = vpop.f32.mrf.mxu0
    %490 = vdwg.mxu0
    %491 = vmatpush.bf16.msra.mxu0 %v461
    %492 = vmatpush.bf16.msra.mxu0 %v460
    %493 = vmatpush.bf16.msra.mxu0 %v459
    %494 = vmatpush.bf16.msra.mxu0 %v458
    %495 = vmatpush.bf16.msra.mxu0 %v457
    %496 = vmatpush.bf16.msra.mxu0 %v456
    %497 = vmatpush.bf16.msra.mxu0 %v455
    %498 = vmatpush.bf16.msra.mxu0 %v454
    %499 = vmatmul.bf16.gmra.mxu0 %v348
    %v500 = vpop.f32.mrf.mxu0
    %v501 = vadd.f32 %v488, %v500
    %v502 = vpop.f32.mrf.mxu0
    %503 = vdwg.mxu0
    %v504 = vadd.f32 %v349, %v501
    %505 = vst [vmem:[#allocation2] sm:$0xff] %v504
    %v506 = vld [vmem:[#allocation3 + $0x10] sm:$0xff]
    %v507 = vld [vmem:[#allocation3 + $0x38] sm:$0xff]
    %v508 = vld [vmem:[#allocation3 + $0x60] sm:$0xff]
    %v509 = vld [vmem:[#allocation3 + $0x88] sm:$0xff]
    %v510 = vld [vmem:[#allocation3 + $0xb0] sm:$0xff]
    %v511 = vld [vmem:[#allocation3 + $0xd8] sm:$0xff]
    %v518 = vunpack.c.l.b16 %v506
    %v519 = vunpack.c.h.b16 %v506
    %v520 = vunpack.c.l.b16 %v507
    %v521 = vunpack.c.h.b16 %v507
    %v522 = vunpack.c.l.b16 %v508
    %v523 = vunpack.c.h.b16 %v508
    %v524 = vunpack.c.l.b16 %v509
    %v525 = vunpack.c.h.b16 %v509
    %v526 = vunpack.c.l.b16 %v510
    %v527 = vunpack.c.h.b16 %v510
    %v528 = vunpack.c.l.b16 %v511
    %v529 = vunpack.c.h.b16 %v511
    %v530 = vpack.c.b16 %v520, %v518
    %v531 = vpack.c.b16 %v521, %v519
    %v532 = vpack.c.b16 %v524, %v522
    %v533 = vpack.c.b16 %v525, %v523
    %v534 = vpack.c.b16 %v528, %v526
    %v535 = vpack.c.b16 %v529, %v527
    %542 = vmatpush.bf16.msra.mxu0 0
    %543 = vmatpush.bf16.msra.mxu0 0
    %544 = vmatpush.bf16.msra.mxu0 0
    %545 = vmatpush.bf16.msra.mxu0 0
    %546 = vmatpush.bf16.msra.mxu0 0
    %547 = vmatpush.bf16.msra.mxu0 %v534
    %548 = vmatpush.bf16.msra.mxu0 %v532
    %549 = vmatpush.bf16.msra.mxu0 %v530
    %550 = vmatmul.bf16.gmra.mxu0 %v94
    %v551 = vpop.f32.mrf.mxu0
    %v552 = vadd.f32 0.0, %v551
    %v553 = vpop.f32.mrf.mxu0
    %554 = vdwg.mxu0
    %555 = vmatpush.bf16.msra.mxu0 0
    %556 = vmatpush.bf16.msra.mxu0 0
    %557 = vmatpush.bf16.msra.mxu0 0
    %558 = vmatpush.bf16.msra.mxu0 0
    %559 = vmatpush.bf16.msra.mxu0 0
    %560 = vmatpush.bf16.msra.mxu0 %v535
    %561 = vmatpush.bf16.msra.mxu0 %v533
    %562 = vmatpush.bf16.msra.mxu0 %v531
    %563 = vmatmul.bf16.gmra.mxu0 %v94
    %v564 = vpop.f32.mrf.mxu0
    %v565 = vadd.f32 0.0, %v564
    %v566 = vpop.f32.mrf.mxu0
    %567 = vdwg.mxu0
    %v568 = vmax.f32 %v552, 0.0
    %v569 = vmax.f32 %v565, 0.0
    %v570 = vpack.c.bf16 %v568, %v568
    %v571 = vpack.c.bf16 %v569, %v569
    %v572 = vld [vmem:[#allocation2] sm:$0xff]
    %v573 = vld [vmem:[#allocation5 + $0x100] sm:$0xf]
    %v574 = vld [vmem:[#allocation5 + $0x104] sm:$0xf]
    %v575 = vld [vmem:[#allocation5 + $0x108] sm:$0xf]
    %v576 = vld [vmem:[#allocation5 + $0x10c] sm:$0xf]
    %v577 = vld [vmem:[#allocation5 + $0x110] sm:$0xf]
    %v578 = vld [vmem:[#allocation5 + $0x114] sm:$0xf]
    %v579 = vld [vmem:[#allocation5 + $0x118] sm:$0xf]
    %v580 = vld [vmem:[#allocation5 + $0x11c] sm:$0xf]
    %v581 = vld [vmem:[#allocation5 + $0x120] sm:$0xf]
    %v582 = vld [vmem:[#allocation5 + $0x124] sm:$0xf]
    %v583 = vld [vmem:[#allocation5 + $0x128] sm:$0xf]
    %v584 = vld [vmem:[#allocation5 + $0x12c] sm:$0xf]
    %v585 = vld [vmem:[#allocation5 + $0x130] sm:$0xf]
    %v586 = vld [vmem:[#allocation5 + $0x134] sm:$0xf]
    %v587 = vld [vmem:[#allocation5 + $0x138] sm:$0xf]
    %v588 = vld [vmem:[#allocation5 + $0x13c] sm:$0xf]
    %v589 = vld [vmem:[#allocation5 + $0x140] sm:$0xf]
    %v590 = vld [vmem:[#allocation5 + $0x144] sm:$0xf]
    %v591 = vld [vmem:[#allocation5 + $0x148] sm:$0xf]
    %v592 = vld [vmem:[#allocation5 + $0x14c] sm:$0xf]
    %v593 = vld [vmem:[#allocation5 + $0x150] sm:$0xf]
    %v594 = vld [vmem:[#allocation5 + $0x154] sm:$0xf]
    %v595 = vld [vmem:[#allocation5 + $0x158] sm:$0xf]
    %v596 = vld [vmem:[#allocation5 + $0x15c] sm:$0xf]
    %v597 = vld [vmem:[#allocation5 + $0x160] sm:$0xf]
    %v598 = vld [vmem:[#allocation5 + $0x164] sm:$0xf]
    %v599 = vld [vmem:[#allocation5 + $0x168] sm:$0xf]
    %v600 = vld [vmem:[#allocation5 + $0x16c] sm:$0xf]
    %v601 = vld [vmem:[#allocation5 + $0x170] sm:$0xf]
    %v602 = vld [vmem:[#allocation5 + $0x174] sm:$0xf]
    %v603 = vld [vmem:[#allocation5 + $0x178] sm:$0xf]
    %v604 = vld [vmem:[#allocation5 + $0x17c] sm:$0xf]
    %v637 = vunpack.c.l.b16 %v573
    %v638 = vunpack.c.l.b16 %v574
    %v639 = vunpack.c.l.b16 %v575
    %v640 = vunpack.c.l.b16 %v576
    %v641 = vunpack.c.l.b16 %v577
    %v642 = vunpack.c.l.b16 %v578
    %v643 = vunpack.c.l.b16 %v579
    %v644 = vunpack.c.l.b16 %v580
    %v645 = vunpack.c.l.b16 %v581
    %v646 = vunpack.c.l.b16 %v582
    %v647 = vunpack.c.l.b16 %v583
    %v648 = vunpack.c.l.b16 %v584
    %v649 = vunpack.c.l.b16 %v585
    %v650 = vunpack.c.l.b16 %v586
    %v651 = vunpack.c.l.b16 %v587
    %v652 = vunpack.c.l.b16 %v588
    %v653 = vunpack.c.l.b16 %v589
    %v654 = vunpack.c.l.b16 %v590
    %v655 = vunpack.c.l.b16 %v591
    %v656 = vunpack.c.l.b16 %v592
    %v657 = vunpack.c.l.b16 %v593
    %v658 = vunpack.c.l.b16 %v594
    %v659 = vunpack.c.l.b16 %v595
    %v660 = vunpack.c.l.b16 %v596
    %v661 = vunpack.c.l.b16 %v597
    %v662 = vunpack.c.l.b16 %v598
    %v663 = vunpack.c.l.b16 %v599
    %v664 = vunpack.c.l.b16 %v600
    %v665 = vunpack.c.l.b16 %v601
    %v666 = vunpack.c.l.b16 %v602
    %v667 = vunpack.c.l.b16 %v603
    %v668 = vunpack.c.l.b16 %v604
    %v669 = vpack.c.b16 %v638, %v637
    %v670 = vpack.c.b16 %v640, %v639
    %v671 = vpack.c.b16 %v642, %v641
    %v672 = vpack.c.b16 %v644, %v643
    %v673 = vpack.c.b16 %v646, %v645
    %v674 = vpack.c.b16 %v648, %v647
    %v675 = vpack.c.b16 %v650, %v649
    %v676 = vpack.c.b16 %v652, %v651
    %v677 = vpack.c.b16 %v654, %v653
    %v678 = vpack.c.b16 %v656, %v655
    %v679 = vpack.c.b16 %v658, %v657
    %v680 = vpack.c.b16 %v660, %v659
    %v681 = vpack.c.b16 %v662, %v661
    %v682 = vpack.c.b16 %v664, %v663
    %v683 = vpack.c.b16 %v666, %v665
    %v684 = vpack.c.b16 %v668, %v667
    %701 = vmatpush.bf16.msra.mxu0 %v676
    %702 = vmatpush.bf16.msra.mxu0 %v675
    %703 = vmatpush.bf16.msra.mxu0 %v674
    %704 = vmatpush.bf16.msra.mxu0 %v673
    %705 = vmatpush.bf16.msra.mxu0 %v672
    %706 = vmatpush.bf16.msra.mxu0 %v671
    %707 = vmatpush.bf16.msra.mxu0 %v670
    %708 = vmatpush.bf16.msra.mxu0 %v669
    %709 = vmatmul.bf16.gmra.mxu0 %v570
    %v710 = vpop.f32.mrf.mxu0
    %v711 = vadd.f32 0.0, %v710
    %v712 = vpop.f32.mrf.mxu0
    %713 = vdwg.mxu0
    %714 = vmatpush.bf16.msra.mxu0 %v684
    %715 = vmatpush.bf16.msra.mxu0 %v683
    %716 = vmatpush.bf16.msra.mxu0 %v682
    %717 = vmatpush.bf16.msra.mxu0 %v681
    %718 = vmatpush.bf16.msra.mxu0 %v680
    %719 = vmatpush.bf16.msra.mxu0 %v679
    %720 = vmatpush.bf16.msra.mxu0 %v678
    %721 = vmatpush.bf16.msra.mxu0 %v677
    %722 = vmatmul.bf16.gmra.mxu0 %v571
    %v723 = vpop.f32.mrf.mxu0
    %v724 = vadd.f32 %v711, %v723
    %v725 = vpop.f32.mrf.mxu0
    %726 = vdwg.mxu0
    %v727 = vadd.f32 %v572, %v724
    %728 = vst [vmem:[#allocation2] sm:$0xff] %v727
    %v729 = vld [vmem:[#allocation3 + $0x18] sm:$0xff]
    %v730 = vld [vmem:[#allocation3 + $0x40] sm:$0xff]
    %v731 = vld [vmem:[#allocation3 + $0x68] sm:$0xff]
    %v732 = vld [vmem:[#allocation3 + $0x90] sm:$0xff]
    %v733 = vld [vmem:[#allocation3 + $0xb8] sm:$0xff]
    %v734 = vld [vmem:[#allocation3 + $0xe0] sm:$0xff]
    %v741 = vunpack.c.l.b16 %v729
    %v742 = vunpack.c.h.b16 %v729
    %v743 = vunpack.c.l.b16 %v730
    %v744 = vunpack.c.h.b16 %v730
    %v745 = vunpack.c.l.b16 %v731
    %v746 = vunpack.c.h.b16 %v731
    %v747 = vunpack.c.l.b16 %v732
    %v748 = vunpack.c.h.b16 %v732
    %v749 = vunpack.c.l.b16 %v733
    %v750 = vunpack.c.h.b16 %v733
    %v751 = vunpack.c.l.b16 %v734
    %v752 = vunpack.c.h.b16 %v734
    %v753 = vpack.c.b16 %v743, %v741
    %v754 = vpack.c.b16 %v744, %v742
    %v755 = vpack.c.b16 %v747, %v745
    %v756 = vpack.c.b16 %v748, %v746
    %v757 = vpack.c.b16 %v751, %v749
    %v758 = vpack.c.b16 %v752, %v750
    %765 = vmatpush.bf16.msra.mxu0 0
    %766 = vmatpush.bf16.msra.mxu0 0
    %767 = vmatpush.bf16.msra.mxu0 0
    %768 = vmatpush.bf16.msra.mxu0 0
    %769 = vmatpush.bf16.msra.mxu0 0
    %770 = vmatpush.bf16.msra.mxu0 %v757
    %771 = vmatpush.bf16.msra.mxu0 %v755
    %772 = vmatpush.bf16.msra.mxu0 %v753
    %773 = vmatmul.bf16.gmra.mxu0 %v94
    %v774 = vpop.f32.mrf.mxu0
    %v775 = vadd.f32 0.0, %v774
    %v776 = vpop.f32.mrf.mxu0
    %777 = vdwg.mxu0
    %778 = vmatpush.bf16.msra.mxu0 0
    %779 = vmatpush.bf16.msra.mxu0 0
    %780 = vmatpush.bf16.msra.mxu0 0
    %781 = vmatpush.bf16.msra.mxu0 0
    %782 = vmatpush.bf16.msra.mxu0 0
    %783 = vmatpush.bf16.msra.mxu0 %v758
    %784 = vmatpush.bf16.msra.mxu0 %v756
    %785 = vmatpush.bf16.msra.mxu0 %v754
    %786 = vmatmul.bf16.gmra.mxu0 %v94
    %v787 = vpop.f32.mrf.mxu0
    %v788 = vadd.f32 0.0, %v787
    %v789 = vpop.f32.mrf.mxu0
    %790 = vdwg.mxu0
    %v791 = vmax.f32 %v775, 0.0
    %v792 = vmax.f32 %v788, 0.0
    %v793 = vpack.c.bf16 %v791, %v791
    %v794 = vpack.c.bf16 %v792, %v792
    %v795 = vld [vmem:[#allocation2] sm:$0xff]
    %v796 = vld [vmem:[#allocation5 + $0x180] sm:$0xf]
    %v797 = vld [vmem:[#allocation5 + $0x184] sm:$0xf]
    %v798 = vld [vmem:[#allocation5 + $0x188] sm:$0xf]
    %v799 = vld [vmem:[#allocation5 + $0x18c] sm:$0xf]
    %v800 = vld [vmem:[#allocation5 + $0x190] sm:$0xf]
    %v801 = vld [vmem:[#allocation5 + $0x194] sm:$0xf]
    %v802 = vld [vmem:[#allocation5 + $0x198] sm:$0xf]
    %v803 = vld [vmem:[#allocation5 + $0x19c] sm:$0xf]
    %v804 = vld [vmem:[#allocation5 + $0x1a0] sm:$0xf]
    %v805 = vld [vmem:[#allocation5 + $0x1a4] sm:$0xf]
    %v806 = vld [vmem:[#allocation5 + $0x1a8] sm:$0xf]
    %v807 = vld [vmem:[#allocation5 + $0x1ac] sm:$0xf]
    %v808 = vld [vmem:[#allocation5 + $0x1b0] sm:$0xf]
    %v809 = vld [vmem:[#allocation5 + $0x1b4] sm:$0xf]
    %v810 = vld [vmem:[#allocation5 + $0x1b8] sm:$0xf]
    %v811 = vld [vmem:[#allocation5 + $0x1bc] sm:$0xf]
    %v812 = vld [vmem:[#allocation5 + $0x1c0] sm:$0xf]
    %v813 = vld [vmem:[#allocation5 + $0x1c4] sm:$0xf]
    %v814 = vld [vmem:[#allocation5 + $0x1c8] sm:$0xf]
    %v815 = vld [vmem:[#allocation5 + $0x1cc] sm:$0xf]
    %v816 = vld [vmem:[#allocation5 + $0x1d0] sm:$0xf]
    %v817 = vld [vmem:[#allocation5 + $0x1d4] sm:$0xf]
    %v818 = vld [vmem:[#allocation5 + $0x1d8] sm:$0xf]
    %v819 = vld [vmem:[#allocation5 + $0x1dc] sm:$0xf]
    %v820 = vld [vmem:[#allocation5 + $0x1e0] sm:$0xf]
    %v821 = vld [vmem:[#allocation5 + $0x1e4] sm:$0xf]
    %v822 = vld [vmem:[#allocation5 + $0x1e8] sm:$0xf]
    %v823 = vld [vmem:[#allocation5 + $0x1ec] sm:$0xf]
    %v824 = vld [vmem:[#allocation5 + $0x1f0] sm:$0xf]
    %v825 = vld [vmem:[#allocation5 + $0x1f4] sm:$0xf]
    %v826 = vld [vmem:[#allocation5 + $0x1f8] sm:$0xf]
    %v827 = vld [vmem:[#allocation5 + $0x1fc] sm:$0xf]
    %v860 = vunpack.c.l.b16 %v796
    %v861 = vunpack.c.l.b16 %v797
    %v862 = vunpack.c.l.b16 %v798
    %v863 = vunpack.c.l.b16 %v799
    %v864 = vunpack.c.l.b16 %v800
    %v865 = vunpack.c.l.b16 %v801
    %v866 = vunpack.c.l.b16 %v802
    %v867 = vunpack.c.l.b16 %v803
    %v868 = vunpack.c.l.b16 %v804
    %v869 = vunpack.c.l.b16 %v805
    %v870 = vunpack.c.l.b16 %v806
    %v871 = vunpack.c.l.b16 %v807
    %v872 = vunpack.c.l.b16 %v808
    %v873 = vunpack.c.l.b16 %v809
    %v874 = vunpack.c.l.b16 %v810
    %v875 = vunpack.c.l.b16 %v811
    %v876 = vunpack.c.l.b16 %v812
    %v877 = vunpack.c.l.b16 %v813
    %v878 = vunpack.c.l.b16 %v814
    %v879 = vunpack.c.l.b16 %v815
    %v880 = vunpack.c.l.b16 %v816
    %v881 = vunpack.c.l.b16 %v817
    %v882 = vunpack.c.l.b16 %v818
    %v883 = vunpack.c.l.b16 %v819
    %v884 = vunpack.c.l.b16 %v820
    %v885 = vunpack.c.l.b16 %v821
    %v886 = vunpack.c.l.b16 %v822
    %v887 = vunpack.c.l.b16 %v823
    %v888 = vunpack.c.l.b16 %v824
    %v889 = vunpack.c.l.b16 %v825
    %v890 = vunpack.c.l.b16 %v826
    %v891 = vunpack.c.l.b16 %v827
    %v892 = vpack.c.b16 %v861, %v860
    %v893 = vpack.c.b16 %v863, %v862
    %v894 = vpack.c.b16 %v865, %v864
    %v895 = vpack.c.b16 %v867, %v866
    %v896 = vpack.c.b16 %v869, %v868
    %v897 = vpack.c.b16 %v871, %v870
    %v898 = vpack.c.b16 %v873, %v872
    %v899 = vpack.c.b16 %v875, %v874
    %v900 = vpack.c.b16 %v877, %v876
    %v901 = vpack.c.b16 %v879, %v878
    %v902 = vpack.c.b16 %v881, %v880
    %v903 = vpack.c.b16 %v883, %v882
    %v904 = vpack.c.b16 %v885, %v884
    %v905 = vpack.c.b16 %v887, %v886
    %v906 = vpack.c.b16 %v889, %v888
    %v907 = vpack.c.b16 %v891, %v890
    %924 = vmatpush.bf16.msra.mxu0 %v899
    %925 = vmatpush.bf16.msra.mxu0 %v898
    %926 = vmatpush.bf16.msra.mxu0 %v897
    %927 = vmatpush.bf16.msra.mxu0 %v896
    %928 = vmatpush.bf16.msra.mxu0 %v895
    %929 = vmatpush.bf16.msra.mxu0 %v894
    %930 = vmatpush.bf16.msra.mxu0 %v893
    %931 = vmatpush.bf16.msra.mxu0 %v892
    %932 = vmatmul.bf16.gmra.mxu0 %v793
    %v933 = vpop.f32.mrf.mxu0
    %v934 = vadd.f32 0.0, %v933
    %v935 = vpop.f32.mrf.mxu0
    %936 = vdwg.mxu0
    %937 = vmatpush.bf16.msra.mxu0 %v907
    %938 = vmatpush.bf16.msra.mxu0 %v906
    %939 = vmatpush.bf16.msra.mxu0 %v905
    %940 = vmatpush.bf16.msra.mxu0 %v904
    %941 = vmatpush.bf16.msra.mxu0 %v903
    %942 = vmatpush.bf16.msra.mxu0 %v902
    %943 = vmatpush.bf16.msra.mxu0 %v901
    %944 = vmatpush.bf16.msra.mxu0 %v900
    %945 = vmatmul.bf16.gmra.mxu0 %v794
    %v946 = vpop.f32.mrf.mxu0
    %v947 = vadd.f32 %v934, %v946
    %v948 = vpop.f32.mrf.mxu0
    %949 = vdwg.mxu0
    %v950 = vadd.f32 %v795, %v947
    %951 = vst [vmem:[#allocation2] sm:$0xff] %v950
    %v952 = vld [vmem:[#allocation3 + $0x20] sm:$0xff]
    %v953 = vld [vmem:[#allocation3 + $0x48] sm:$0xff]
    %v954 = vld [vmem:[#allocation3 + $0x70] sm:$0xff]
    %v955 = vld [vmem:[#allocation3 + $0x98] sm:$0xff]
    %v956 = vld [vmem:[#allocation3 + $0xc0] sm:$0xff]
    %v957 = vld [vmem:[#allocation3 + $0xe8] sm:$0xff]
    %v964 = vunpack.c.l.b16 %v952
    %v965 = vunpack.c.h.b16 %v952
    %v966 = vunpack.c.l.b16 %v953
    %v967 = vunpack.c.h.b16 %v953
    %v968 = vunpack.c.l.b16 %v954
    %v969 = vunpack.c.h.b16 %v954
    %v970 = vunpack.c.l.b16 %v955
    %v971 = vunpack.c.h.b16 %v955
    %v972 = vunpack.c.l.b16 %v956
    %v973 = vunpack.c.h.b16 %v956
    %v974 = vunpack.c.l.b16 %v957
    %v975 = vunpack.c.h.b16 %v957
    %v976 = vpack.c.b16 %v966, %v964
    %v977 = vpack.c.b16 %v967, %v965
    %v978 = vpack.c.b16 %v970, %v968
    %v979 = vpack.c.b16 %v971, %v969
    %v980 = vpack.c.b16 %v974, %v972
    %v981 = vpack.c.b16 %v975, %v973
    %988 = vmatpush.bf16.msra.mxu0 0
    %989 = vmatpush.bf16.msra.mxu0 0
    %990 = vmatpush.bf16.msra.mxu0 0
    %991 = vmatpush.bf16.msra.mxu0 0
    %992 = vmatpush.bf16.msra.mxu0 0
    %993 = vmatpush.bf16.msra.mxu0 %v980
    %994 = vmatpush.bf16.msra.mxu0 %v978
    %995 = vmatpush.bf16.msra.mxu0 %v976
    %996 = vmatmul.bf16.gmra.mxu0 %v94
    %v997 = vpop.f32.mrf.mxu0
    %v998 = vadd.f32 0.0, %v997
    %v999 = vpop.f32.mrf.mxu0
    %1000 = vdwg.mxu0
    %1001 = vmatpush.bf16.msra.mxu0 0
    %1002 = vmatpush.bf16.msra.mxu0 0
    %1003 = vmatpush.bf16.msra.mxu0 0
    %1004 = vmatpush.bf16.msra.mxu0 0
    %1005 = vmatpush.bf16.msra.mxu0 0
    %1006 = vmatpush.bf16.msra.mxu0 %v981
    %1007 = vmatpush.bf16.msra.mxu0 %v979
    %1008 = vmatpush.bf16.msra.mxu0 %v977
    %1009 = vmatmul.bf16.gmra.mxu0 %v94
    %v1010 = vpop.f32.mrf.mxu0
    %v1011 = vadd.f32 0.0, %v1010
    %v1012 = vpop.f32.mrf.mxu0
    %1013 = vdwg.mxu0
    %v1014 = vmax.f32 %v998, 0.0
    %v1015 = vmax.f32 %v1011, 0.0
    %v1016 = vpack.c.bf16 %v1014, %v1014
    %v1017 = vpack.c.bf16 %v1015, %v1015
    %v1018 = vld [vmem:[#allocation2] sm:$0xff]
    %v1019 = vld [vmem:[#allocation5 + $0x200] sm:$0xf]
    %v1020 = vld [vmem:[#allocation5 + $0x204] sm:$0xf]
    %v1021 = vld [vmem:[#allocation5 + $0x208] sm:$0xf]
    %v1022 = vld [vmem:[#allocation5 + $0x20c] sm:$0xf]
    %v1023 = vld [vmem:[#allocation5 + $0x210] sm:$0xf]
    %v1024 = vld [vmem:[#allocation5 + $0x214] sm:$0xf]
    %v1025 = vld [vmem:[#allocation5 + $0x218] sm:$0xf]
    %v1026 = vld [vmem:[#allocation5 + $0x21c] sm:$0xf]
    %v1027 = vld [vmem:[#allocation5 + $0x220] sm:$0xf]
    %v1028 = vld [vmem:[#allocation5 + $0x224] sm:$0xf]
    %v1029 = vld [vmem:[#allocation5 + $0x228] sm:$0xf]
    %v1030 = vld [vmem:[#allocation5 + $0x22c] sm:$0xf]
    %v1031 = vld [vmem:[#allocation5 + $0x230] sm:$0xf]
    %v1032 = vld [vmem:[#allocation5 + $0x234] sm:$0xf]
    %v1033 = vld [vmem:[#allocation5 + $0x238] sm:$0xf]
    %v1034 = vld [vmem:[#allocation5 + $0x23c] sm:$0xf]
    %v1035 = vld [vmem:[#allocation5 + $0x240] sm:$0xf]
    %v1036 = vld [vmem:[#allocation5 + $0x244] sm:$0xf]
    %v1037 = vld [vmem:[#allocation5 + $0x248] sm:$0xf]
    %v1038 = vld [vmem:[#allocation5 + $0x24c] sm:$0xf]
    %v1039 = vld [vmem:[#allocation5 + $0x250] sm:$0xf]
    %v1040 = vld [vmem:[#allocation5 + $0x254] sm:$0xf]
    %v1041 = vld [vmem:[#allocation5 + $0x258] sm:$0xf]
    %v1042 = vld [vmem:[#allocation5 + $0x25c] sm:$0xf]
    %v1043 = vld [vmem:[#allocation5 + $0x260] sm:$0xf]
    %v1044 = vld [vmem:[#allocation5 + $0x264] sm:$0xf]
    %v1045 = vld [vmem:[#allocation5 + $0x268] sm:$0xf]
    %v1046 = vld [vmem:[#allocation5 + $0x26c] sm:$0xf]
    %v1047 = vld [vmem:[#allocation5 + $0x270] sm:$0xf]
    %v1048 = vld [vmem:[#allocation5 + $0x274] sm:$0xf]
    %v1049 = vld [vmem:[#allocation5 + $0x278] sm:$0xf]
    %v1050 = vld [vmem:[#allocation5 + $0x27c] sm:$0xf]
    %v1083 = vunpack.c.l.b16 %v1019
    %v1084 = vunpack.c.l.b16 %v1020
    %v1085 = vunpack.c.l.b16 %v1021
    %v1086 = vunpack.c.l.b16 %v1022
    %v1087 = vunpack.c.l.b16 %v1023
    %v1088 = vunpack.c.l.b16 %v1024
    %v1089 = vunpack.c.l.b16 %v1025
    %v1090 = vunpack.c.l.b16 %v1026
    %v1091 = vunpack.c.l.b16 %v1027
    %v1092 = vunpack.c.l.b16 %v1028
    %v1093 = vunpack.c.l.b16 %v1029
    %v1094 = vunpack.c.l.b16 %v1030
    %v1095 = vunpack.c.l.b16 %v1031
    %v1096 = vunpack.c.l.b16 %v1032
    %v1097 = vunpack.c.l.b16 %v1033
    %v1098 = vunpack.c.l.b16 %v1034
    %v1099 = vunpack.c.l.b16 %v1035
    %v1100 = vunpack.c.l.b16 %v1036
    %v1101 = vunpack.c.l.b16 %v1037
    %v1102 = vunpack.c.l.b16 %v1038
    %v1103 = vunpack.c.l.b16 %v1039
    %v1104 = vunpack.c.l.b16 %v1040
    %v1105 = vunpack.c.l.b16 %v1041
    %v1106 = vunpack.c.l.b16 %v1042
    %v1107 = vunpack.c.l.b16 %v1043
    %v1108 = vunpack.c.l.b16 %v1044
    %v1109 = vunpack.c.l.b16 %v1045
    %v1110 = vunpack.c.l.b16 %v1046
    %v1111 = vunpack.c.l.b16 %v1047
    %v1112 = vunpack.c.l.b16 %v1048
    %v1113 = vunpack.c.l.b16 %v1049
    %v1114 = vunpack.c.l.b16 %v1050
    %v1115 = vpack.c.b16 %v1084, %v1083
    %v1116 = vpack.c.b16 %v1086, %v1085
    %v1117 = vpack.c.b16 %v1088, %v1087
    %v1118 = vpack.c.b16 %v1090, %v1089
    %v1119 = vpack.c.b16 %v1092, %v1091
    %v1120 = vpack.c.b16 %v1094, %v1093
    %v1121 = vpack.c.b16 %v1096, %v1095
    %v1122 = vpack.c.b16 %v1098, %v1097
    %v1123 = vpack.c.b16 %v1100, %v1099
    %v1124 = vpack.c.b16 %v1102, %v1101
    %v1125 = vpack.c.b16 %v1104, %v1103
    %v1126 = vpack.c.b16 %v1106, %v1105
    %v1127 = vpack.c.b16 %v1108, %v1107
    %v1128 = vpack.c.b16 %v1110, %v1109
    %v1129 = vpack.c.b16 %v1112, %v1111
    %v1130 = vpack.c.b16 %v1114, %v1113
    %1147 = vmatpush.bf16.msra.mxu0 %v1122
    %1148 = vmatpush.bf16.msra.mxu0 %v1121
    %1149 = vmatpush.bf16.msra.mxu0 %v1120
    %1150 = vmatpush.bf16.msra.mxu0 %v1119
    %1151 = vmatpush.bf16.msra.mxu0 %v1118
    %1152 = vmatpush.bf16.msra.mxu0 %v1117
    %1153 = vmatpush.bf16.msra.mxu0 %v1116
    %1154 = vmatpush.bf16.msra.mxu0 %v1115
    %1155 = vmatmul.bf16.gmra.mxu0 %v1016
    %v1156 = vpop.f32.mrf.mxu0
    %v1157 = vadd.f32 0.0, %v1156
    %v1158 = vpop.f32.mrf.mxu0
    %1159 = vdwg.mxu0
    %1160 = vmatpush.bf16.msra.mxu0 %v1130
    %1161 = vmatpush.bf16.msra.mxu0 %v1129
    %1162 = vmatpush.bf16.msra.mxu0 %v1128
    %1163 = vmatpush.bf16.msra.mxu0 %v1127
    %1164 = vmatpush.bf16.msra.mxu0 %v1126
    %1165 = vmatpush.bf16.msra.mxu0 %v1125
    %1166 = vmatpush.bf16.msra.mxu0 %v1124
    %1167 = vmatpush.bf16.msra.mxu0 %v1123
    %1168 = vmatmul.bf16.gmra.mxu0 %v1017
    %v1169 = vpop.f32.mrf.mxu0
    %v1170 = vadd.f32 %v1157, %v1169
    %v1171 = vpop.f32.mrf.mxu0
    %1172 = vdwg.mxu0
    %v1173 = vadd.f32 %v1018, %v1170
    %1174 = vst [vmem:[#allocation2] sm:$0xff] %v1173
    %v1175 = vld [vmem:[#allocation2] sm:$0xff]
    %v1176 = vmax.f32 %v1175, 0.0
    %v1177 = vpack.c.bf16 %v1176, %v1176
    %v1178 = vld [vmem:[%s3] sm:$0xf]
    %v1179 = vld [vmem:[%s3 + $0x4] sm:$0xf]
    %v1180 = vld [vmem:[%s3 + $0x8] sm:$0xf]
    %v1181 = vld [vmem:[%s3 + $0xc] sm:$0xf]
    %v1182 = vld [vmem:[%s3 + $0x10] sm:$0xf]
    %v1183 = vld [vmem:[%s3 + $0x14] sm:$0xf]
    %v1184 = vld [vmem:[%s3 + $0x18] sm:$0xf]
    %v1185 = vld [vmem:[%s3 + $0x1c] sm:$0xf]
    %v1186 = vld [vmem:[%s3 + $0x20] sm:$0xf]
    %v1187 = vld [vmem:[%s3 + $0x24] sm:$0xf]
    %v1188 = vld [vmem:[%s3 + $0x28] sm:$0xf]
    %v1189 = vld [vmem:[%s3 + $0x2c] sm:$0xf]
    %v1190 = vld [vmem:[%s3 + $0x30] sm:$0xf]
    %v1191 = vld [vmem:[%s3 + $0x34] sm:$0xf]
    %v1192 = vld [vmem:[%s3 + $0x38] sm:$0xf]
    %v1193 = vld [vmem:[%s3 + $0x3c] sm:$0xf]
    %v1194 = vld [vmem:[%s4] sm:$0x1]
    %v1196 = vperm.slane %v1194, 0
    %v1214 = vunpack.c.l.b16 %v1178
    %v1215 = vunpack.c.l.b16 %v1179
    %v1216 = vunpack.c.l.b16 %v1180
    %v1217 = vunpack.c.l.b16 %v1181
    %v1218 = vunpack.c.l.b16 %v1182
    %v1219 = vunpack.c.l.b16 %v1183
    %v1220 = vunpack.c.l.b16 %v1184
    %v1221 = vunpack.c.l.b16 %v1185
    %v1222 = vunpack.c.l.b16 %v1186
    %v1223 = vunpack.c.l.b16 %v1187
    %v1224 = vunpack.c.l.b16 %v1188
    %v1225 = vunpack.c.l.b16 %v1189
    %v1226 = vunpack.c.l.b16 %v1190
    %v1227 = vunpack.c.l.b16 %v1191
    %v1228 = vunpack.c.l.b16 %v1192
    %v1229 = vunpack.c.l.b16 %v1193
    %v1230 = vpack.c.b16 %v1215, %v1214
    %v1231 = vpack.c.b16 %v1217, %v1216
    %v1232 = vpack.c.b16 %v1219, %v1218
    %v1233 = vpack.c.b16 %v1221, %v1220
    %v1234 = vpack.c.b16 %v1223, %v1222
    %v1235 = vpack.c.b16 %v1225, %v1224
    %v1236 = vpack.c.b16 %v1227, %v1226
    %v1237 = vpack.c.b16 %v1229, %v1228
    %1246 = vmatpush.bf16.msra.mxu0 %v1237
    %1247 = vmatpush.bf16.msra.mxu0 %v1236
    %1248 = vmatpush.bf16.msra.mxu0 %v1235
    %1249 = vmatpush.bf16.msra.mxu0 %v1234
    %1250 = vmatpush.bf16.msra.mxu0 %v1233
    %1251 = vmatpush.bf16.msra.mxu0 %v1232
    %1252 = vmatpush.bf16.msra.mxu0 %v1231
    %1253 = vmatpush.bf16.msra.mxu0 %v1230
    %1254 = vmatmul.bf16.gmra.mxu0 %v1177
    %v1255 = vpop.f32.mrf.mxu0
    %v1256 = vadd.f32 %v1196, %v1255
    %v1257 = vpop.f32.mrf.mxu0
    %1258 = vdwg.mxu0
    %vm1259 = vcmask 56320
    %1260 = vst.msk [vmem:[%s5] sm:$0xff] %vm1259, %v1256
    // Predicated region
    $region30: #{_forward_impl.1} parent=1 // pred_check
      _
    $region31: #{_forward_impl.1} parent=1 // pred_check_branch
      %1262 = sbr.rel (0) target = $region33
    $region32: #{_forward_impl.1} parent=1 // pred_region
      _
    $region33: #{_forward_impl.1} parent=1 // pred_fallthru
      _
    // Predicated region
    $region34: #{_forward_impl.1} parent=1 // pred_check
      _
    $region35: #{_forward_impl.1} parent=1 // pred_check_branch
      %1264 = sbr.rel (0) target = $region37
    $region36: #{_forward_impl.1} parent=1 // pred_region
      _
    $region37: #{_forward_impl.1} parent=1 // pred_fallthru
      _
    %1265 = vsyncpa [#allocation4], 1
    %1266 = vsyncpa [#allocation6], 1

</llo_original>
